<compile_context>
chip_gen: v5e
topology: v5e:2x2
jax: 0.10.0
libtpu: 0.0.40
codegen_flags: <defaults>
</compile_context>

<pallas_src>
import functools
import math

import jax
import jax.numpy as jnp
from jax.experimental import pallas as pl
from jax.experimental.pallas import tpu as pltpu


def _hash_u32(x):
    """32-bit integer mix (lowbias32 finalizer) - cheap in-kernel counter hash."""
    x = x ^ (x >> 16)
    x = x * jnp.uint32(0x7FEB352D)
    x = x ^ (x >> 15)
    x = x * jnp.uint32(0x846CA68B)
    x = x ^ (x >> 16)
    return x


def _mlp_kernel(seed_ref,                    # scalar-prefetch (SMEM) int32[1]
                x_ref,                       # (TB, F)  input tile
                w1_ref, b1_ref,              # (128, F) bf16, (128, 1) f32
                w2_ref, b2_ref,              # (32, 128) bf16, (32, 1) f32
                w3_ref, b3_ref,              # (1, 32)  bf16, (1, 1)  f32
                o_ref,                       # (1, 1, TB) f32 output tile
                *, training: bool):
    # Transpose the batch tile so batch sits on the lane axis; all activations and the
    # final output are then lane-dense.
    xt = x_ref[...].astype(jnp.bfloat16).T                      # (F, TB) bf16

    # layer_1 + ReLU
    h1 = jnp.dot(w1_ref[...], xt,
                 preferred_element_type=jnp.float32) + b1_ref[...]   # (128, TB) f32
    h1 = jnp.maximum(h1, 0.0)

    # dropout(p=0.5)
    if training:
        # TODO(synk): distributionally-equivalent Bernoulli(0.5) via a counter hash;
        # cannot be bit-identical to torch's RNG stream.
        seed = seed_ref[0].astype(jnp.uint32)
        tile = pl.program_id(0).astype(jnp.uint32)
        r = jax.lax.broadcasted_iota(jnp.int32, h1.shape, 0).astype(jnp.uint32)
        c = jax.lax.broadcasted_iota(jnp.int32, h1.shape, 1).astype(jnp.uint32)
        ctr = (r * jnp.uint32(0x9E3779B9)
               + c * jnp.uint32(0x85EBCA6B)
               + tile * jnp.uint32(0xC2B2AE35)
               + seed)
        keep = (_hash_u32(ctr) & jnp.uint32(1)) == jnp.uint32(0)
        h1 = jnp.where(keep, h1 * 2.0, 0.0)                     # scale by 1/(1-p) = 2
    # torch applies relu again after dropout; h1 is already >= 0, so it is a no-op here.

    # layer_2 + ReLU
    h2 = jnp.dot(w2_ref[...], h1.astype(jnp.bfloat16),
                 preferred_element_type=jnp.float32) + b2_ref[...]   # (32, TB) f32
    h2 = jnp.maximum(h2, 0.0)

    # layer_out  -> (1, TB): naturally lane-dense
    out = jnp.dot(w3_ref[...], h2.astype(jnp.bfloat16),
                  preferred_element_type=jnp.float32) + b3_ref[...]  # (1, TB) f32
    o_ref[...] = out.reshape(o_ref.shape).astype(o_ref.dtype)


def dnn_drop_regression(x, params, *, training: bool = False, seed: int = 0,
                        block_rows: int = 1024):
    """Fused MLP forward.  x: [B, F] (f32 or bf16) -> [B, 1] f32.

    Weights are in PyTorch layout: W_l is (out_features, in_features), b_l is
    (out_features, 1).  Passing x as bf16 halves the HBM bytes of the mem-bound
    input stream.
    """
    w1, b1, w2, b2, w3, b3 = params
    B, F = x.shape
    H1, H2 = w1.shape[0], w2.shape[0]

    TB = int(block_rows)
    assert TB % 128 == 0, "block_rows must be a multiple of 128 (lane-dense output)"
    num_tiles = pl.cdiv(B, TB)
    B_pad = num_tiles * TB
    if B_pad != B:
        x = jnp.pad(x, ((0, B_pad - B), (0, 0)))

    # One-time bf16 cast of the tiny, grid-resident weights; biases stay f32.
    w1b = w1.astype(jnp.bfloat16)
    w2b = w2.astype(jnp.bfloat16)
    w3b = w3.astype(jnp.bfloat16)
    seed_arr = jnp.asarray([seed], dtype=jnp.int32)

    kernel = functools.partial(_mlp_kernel, training=training)

    grid_spec = pltpu.PrefetchScalarGridSpec(
        num_scalar_prefetch=1,                 # seed lands in SMEM
        grid=(num_tiles,),
        in_specs=[
            pl.BlockSpec((TB, F), lambda i, s: (i, 0)),     # x: streamed per tile
            pl.BlockSpec((H1, F), lambda i, s: (0, 0)),     # w1: resident
            pl.BlockSpec((H1, 1), lambda i, s: (0, 0)),     # b1
            pl.BlockSpec((H2, H1), lambda i, s: (0, 0)),    # w2
            pl.BlockSpec((H2, 1), lambda i, s: (0, 0)),     # b2
            pl.BlockSpec((1, H2), lambda i, s: (0, 0)),     # w3
            pl.BlockSpec((1, 1), lambda i, s: (0, 0)),      # b3
        ],
        out_specs=pl.BlockSpec((1, 1, TB), lambda i, s: (i, 0, 0)),
    )

    out = pl.pallas_call(
        kernel,
        out_shape=jax.ShapeDtypeStruct((num_tiles, 1, TB), jnp.float32),
        grid_spec=grid_spec,
        compiler_params=pltpu.CompilerParams(
            dimension_semantics=("parallel",),   # v7x: shard batch tiles across both TCs
        ),
    )(seed_arr, x, w1b, b1, w2b, b2, w3b, b3)

    # (num_tiles, 1, TB) row-major == batch order; drop the padding rows.
    return out.reshape(B_pad, 1)[:B]


def init_params(key, num_features):
    """nn.Linear-style init, PyTorch layout: W (out, in), b (out, 1)."""
    dims = [(num_features, 128), (128, 32), (32, 1)]
    params = []
    for fan_in, fan_out in dims:
        key, kw, kb = jax.random.split(key, 3)
        bound = 1.0 / math.sqrt(fan_in)
        w = jax.random.uniform(kw, (fan_out, fan_in), jnp.float32, -bound, bound)
        b = jax.random.uniform(kb, (fan_out, 1), jnp.float32, -bound, bound)
        params += [w, b]
    return tuple(params)


def reference_eval(x, params):
    """Pure-JAX f32 reference for eval mode (dropout = identity)."""
    w1, b1, w2, b2, w3, b3 = params
    h1 = jnp.maximum(x @ w1.T + b1.reshape(1, -1), 0.0)
    h1 = jnp.maximum(h1, 0.0)                      # torch's post-dropout relu (no-op)
    h2 = jnp.maximum(h1 @ w2.T + b2.reshape(1, -1), 0.0)
    return h2 @ w3.T + b3.reshape(1, -1)


if __name__ == "__main__":
    key = jax.random.PRNGKey(0)
    k_in, k_par = jax.random.split(key)

    batch, num_features = 500, 32                  # non-multiple of the tile -> exercises padding
    x = jax.random.normal(k_in, (batch, num_features), jnp.float32)
    params = init_params(k_par, num_features)

    # Eval mode (dropout = identity): check against the pure-JAX f32 reference.
    out_eval = jax.block_until_ready(
        dnn_drop_regression(x, params, training=False, block_rows=256))
    ref = reference_eval(x, params)
    assert out_eval.shape == (batch, 1)
    max_diff = float(jnp.max(jnp.abs(out_eval - ref)))
    assert jnp.allclose(out_eval, ref, atol=5e-2, rtol=5e-2), f"max |diff| = {max_diff}"

    # Training mode: exercise the in-kernel dropout path.
    out_train = jax.block_until_ready(
        dnn_drop_regression(x, params, training=True, seed=1234, block_rows=256))
    assert out_train.shape == (batch, 1)
    assert bool(jnp.all(jnp.isfinite(out_train)))

    print("KERNEL_OK")
</pallas_src>

<mosaic_0001>
module attributes {stable_mosaic.version = 11 : i64} {
  func.func @_mlp_kernel(%arg0: i32, %arg1: memref<1xi32, #tpu.memory_space<smem>>, %arg2: memref<256x32xf32, #tpu.memory_space<vmem>>, %arg3: memref<128x32xbf16, #tpu.memory_space<vmem>>, %arg4: memref<128x1xf32, #tpu.memory_space<vmem>>, %arg5: memref<32x128xbf16, #tpu.memory_space<vmem>>, %arg6: memref<32x1xf32, #tpu.memory_space<vmem>>, %arg7: memref<1x32xbf16, #tpu.memory_space<vmem>>, %arg8: memref<1x1xf32, #tpu.memory_space<vmem>>, %arg9: memref<1x1x256xf32, #tpu.memory_space<vmem>>) attributes {dimension_semantics = [#tpu.dimension_semantics<parallel>], iteration_bounds = array<i64: 2>, scalar_prefetch = 1 : i64, scratch_operands = 0 : i64, tpu.core_type = #tpu.core_type<tc>, window_params = [{transform_indices = @transform_0, window_bounds = array<i64: 256, 32>}, {pipeline_mode = #tpu.pipeline_mode<synchronous>, transform_indices = @transform_1, window_bounds = array<i64: 128, 32>}, {pipeline_mode = #tpu.pipeline_mode<synchronous>, transform_indices = @transform_2, window_bounds = array<i64: 128, 1>}, {pipeline_mode = #tpu.pipeline_mode<synchronous>, transform_indices = @transform_3, window_bounds = array<i64: 32, 128>}, {pipeline_mode = #tpu.pipeline_mode<synchronous>, transform_indices = @transform_4, window_bounds = array<i64: 32, 1>}, {pipeline_mode = #tpu.pipeline_mode<synchronous>, transform_indices = @transform_5, window_bounds = array<i64: 1, 32>}, {pipeline_mode = #tpu.pipeline_mode<synchronous>, transform_indices = @transform_6, window_bounds = array<i64: 1, 1>}, {transform_indices = @transform_7, window_bounds = array<i64: 1, 1, 256>}]} {
    %c0 = arith.constant 0 : index
    %c0_0 = arith.constant 0 : index
    %0 = vector.load %arg2[%c0, %c0_0] : memref<256x32xf32, #tpu.memory_space<vmem>>, vector<256x32xf32>
    %1 = arith.truncf %0 : vector<256x32xf32> to vector<256x32xbf16>
    %2 = tpu.transpose %1, [1, 0] : vector<256x32xbf16> -> vector<32x256xbf16>
    %c0_1 = arith.constant 0 : index
    %c0_2 = arith.constant 0 : index
    %3 = vector.load %arg3[%c0_1, %c0_2] : memref<128x32xbf16, #tpu.memory_space<vmem>>, vector<128x32xbf16>
    %cst = arith.constant dense<0.000000e+00> : vector<128x256xf32>
    %4 = tpu.matmul %3, %2, %cst {dimension_numbers = #tpu.dot_dimension_numbers<[1], [0], [0], [1], [0, 0, 1, 1], [], []>} : vector<128x32xbf16>, vector<32x256xbf16>, vector<128x256xf32> -> vector<128x256xf32>
    %c0_3 = arith.constant 0 : index
    %c0_4 = arith.constant 0 : index
    %5 = vector.load %arg4[%c0_3, %c0_4] : memref<128x1xf32, #tpu.memory_space<vmem>>, vector<128x1xf32>
    %6 = vector.broadcast %5 : vector<128x1xf32> to vector<128x256xf32>
    %7 = arith.addf %4, %6 : vector<128x256xf32>
    %cst_5 = arith.constant 0.000000e+00 : f32
    %8 = vector.broadcast %cst_5 : f32 to vector<128x256xf32>
    %9 = arith.maximumf %7, %8 : vector<128x256xf32>
    %c0_6 = arith.constant 0 : index
    %c0_7 = arith.constant 0 : index
    %10 = vector.load %arg5[%c0_6, %c0_7] : memref<32x128xbf16, #tpu.memory_space<vmem>>, vector<32x128xbf16>
    %11 = arith.truncf %9 : vector<128x256xf32> to vector<128x256xbf16>
    %cst_8 = arith.constant dense<0.000000e+00> : vector<32x256xf32>
    %12 = tpu.matmul %10, %11, %cst_8 {dimension_numbers = #tpu.dot_dimension_numbers<[1], [0], [0], [1], [0, 0, 1, 1], [], []>} : vector<32x128xbf16>, vector<128x256xbf16>, vector<32x256xf32> -> vector<32x256xf32>
    %c0_9 = arith.constant 0 : index
    %c0_10 = arith.constant 0 : index
    %13 = vector.load %arg6[%c0_9, %c0_10] : memref<32x1xf32, #tpu.memory_space<vmem>>, vector<32x1xf32>
    %14 = vector.broadcast %13 : vector<32x1xf32> to vector<32x256xf32>
    %15 = arith.addf %12, %14 : vector<32x256xf32>
    %cst_11 = arith.constant 0.000000e+00 : f32
    %16 = vector.broadcast %cst_11 : f32 to vector<32x256xf32>
    %17 = arith.maximumf %15, %16 : vector<32x256xf32>
    %c0_12 = arith.constant 0 : index
    %c0_13 = arith.constant 0 : index
    %18 = vector.load %arg7[%c0_12, %c0_13] : memref<1x32xbf16, #tpu.memory_space<vmem>>, vector<1x32xbf16>
    %19 = arith.truncf %17 : vector<32x256xf32> to vector<32x256xbf16>
    %cst_14 = arith.constant dense<0.000000e+00> : vector<1x256xf32>
    %20 = tpu.matmul %18, %19, %cst_14 {dimension_numbers = #tpu.dot_dimension_numbers<[1], [0], [0], [1], [0, 0, 1, 1], [], []>} : vector<1x32xbf16>, vector<32x256xbf16>, vector<1x256xf32> -> vector<1x256xf32>
    %c0_15 = arith.constant 0 : index
    %c0_16 = arith.constant 0 : index
    %21 = vector.load %arg8[%c0_15, %c0_16] : memref<1x1xf32, #tpu.memory_space<vmem>>, vector<1x1xf32>
    %22 = vector.broadcast %21 : vector<1x1xf32> to vector<1x256xf32>
    %23 = arith.addf %20, %22 : vector<1x256xf32>
    %24 = vector.shape_cast %23 : vector<1x256xf32> to vector<1x1x256xf32>
    %c0_17 = arith.constant 0 : index
    %c0_18 = arith.constant 0 : index
    %c0_19 = arith.constant 0 : index
    %25 = vector.load %arg9[%c0_17, %c0_18, %c0_19] : memref<1x1x256xf32, #tpu.memory_space<vmem>>, vector<1x1x256xf32>
    tpu.vector_store %arg9[%c0_17, %c0_18, %c0_19], %24 {strides = array<i32>} : memref<1x1x256xf32, #tpu.memory_space<vmem>>, vector<1x1x256xf32>,
    return
  }
  func.func @transform_0(%arg0: i32, %arg1: memref<1xi32, #tpu.memory_space<smem>>) -> (i32, i32) {
    %c0_i32 = arith.constant 0 : i32
    %c0_i32_0 = arith.constant 0 : i32
    return %arg0, %c0_i32 : i32, i32
  }
  func.func @transform_1(%arg0: i32, %arg1: memref<1xi32, #tpu.memory_space<smem>>) -> (i32, i32) {
    %c0_i32 = arith.constant 0 : i32
    %c0_i32_0 = arith.constant 0 : i32
    %c0_i32_1 = arith.constant 0 : i32
    return %c0_i32, %c0_i32_0 : i32, i32
  }
  func.func @transform_2(%arg0: i32, %arg1: memref<1xi32, #tpu.memory_space<smem>>) -> (i32, i32) {
    %c0_i32 = arith.constant 0 : i32
    %c0_i32_0 = arith.constant 0 : i32
    %c0_i32_1 = arith.constant 0 : i32
    return %c0_i32, %c0_i32_0 : i32, i32
  }
  func.func @transform_3(%arg0: i32, %arg1: memref<1xi32, #tpu.memory_space<smem>>) -> (i32, i32) {
    %c0_i32 = arith.constant 0 : i32
    %c0_i32_0 = arith.constant 0 : i32
    %c0_i32_1 = arith.constant 0 : i32
    return %c0_i32, %c0_i32_0 : i32, i32
  }
  func.func @transform_4(%arg0: i32, %arg1: memref<1xi32, #tpu.memory_space<smem>>) -> (i32, i32) {
    %c0_i32 = arith.constant 0 : i32
    %c0_i32_0 = arith.constant 0 : i32
    %c0_i32_1 = arith.constant 0 : i32
    return %c0_i32, %c0_i32_0 : i32, i32
  }
  func.func @transform_5(%arg0: i32, %arg1: memref<1xi32, #tpu.memory_space<smem>>) -> (i32, i32) {
    %c0_i32 = arith.constant 0 : i32
    %c0_i32_0 = arith.constant 0 : i32
    %c0_i32_1 = arith.constant 0 : i32
    return %c0_i32, %c0_i32_0 : i32, i32
  }
  func.func @transform_6(%arg0: i32, %arg1: memref<1xi32, #tpu.memory_space<smem>>) -> (i32, i32) {
    %c0_i32 = arith.constant 0 : i32
    %c0_i32_0 = arith.constant 0 : i32
    %c0_i32_1 = arith.constant 0 : i32
    return %c0_i32, %c0_i32_0 : i32, i32
  }
  func.func @transform_7(%arg0: i32, %arg1: memref<1xi32, #tpu.memory_space<smem>>) -> (i32, i32, i32) {
    %c0_i32 = arith.constant 0 : i32
    %c0_i32_0 = arith.constant 0 : i32
    %c0_i32_1 = arith.constant 0 : i32
    return %arg0, %c0_i32, %c0_i32_0 : i32, i32, i32
  }
}

</mosaic_0001>

<llo_original>
// kernel: tpu_custom_call.1
$region0: #{tpu_custom_call.1}
  #allocation0 [shape = 'u32[]', space=smem, size = 0x4, offset = 0x4, fixed_abs, tag = 'smem constant byte address 0x4 - core index']
  #allocation1 [shape = 'u32[72,128]{1,0:T(1,128)}', space=vmem, size = 0x9000, scoped, tag = 'internal scratch']
  #allocation2 [shape = 's32[1]{0}', space=sflag, size = 0x4, scoped, tag = 'scoped memory for tpu_custom_call.1']
  #allocation3 [shape = 's32[1]{0:T(128)S(6)}', space=smem, size = 0x200, scoped, tag = 'prefetched SMEM operand 0']
  #allocation4 [shape = 'f32[1,1]{1,0:T(1,128)S(1)}', space=vmem, size = 0x200, scoped, tag = 'scoped memory for tpu_custom_call.1']
  %s0 = inlined_call_operand.<no memory space> [shape: s32[1], index: 0, kind: input, shape index: {}]
  %s1 = inlined_call_operand.vmem [shape: f32[512,32], index: 1, kind: input, shape index: {}]
  %s2 = inlined_call_operand.vmem [shape: bf16[128,32], index: 2, kind: input, shape index: {}]
  %s3 = inlined_call_operand.vmem [shape: f32[128,1], index: 3, kind: input, shape index: {}]
  %s4 = inlined_call_operand.vmem [shape: bf16[32,128], index: 4, kind: input, shape index: {}]
  %s5 = inlined_call_operand.vmem [shape: f32[32,1], index: 5, kind: input, shape index: {}]
  %s6 = inlined_call_operand.vmem [shape: bf16[1,32], index: 6, kind: input, shape index: {}]
  %s7 = inlined_call_operand.<no memory space> [shape: f32[1,1], index: 7, kind: input, shape index: {}]
  %s8 = inlined_call_operand.hbm [shape: f32[2,1,256], index: 8, kind: output, shape index: {}]
  %s9 = sld [smem:[#allocation0]]
  $region61: #{tpu_custom_call.1} parent=0
    _
  %s11 = ssub.s32 1, %s9
  %s12 = scalar_select 0, %s11, %s9
  %13 = sst [smem:[#allocation3]] %s0
  %v14 = vstv %s7
  %15 = vst [vmem:[#allocation4] sm:$0x1] %v14
  $region1: #{tpu_custom_call.1} parent=0
    #allocation5 [shape = 'u8[2048]{0}', space=vmem, size = 0x800, scoped, tag = 'output window, operand 0']
    #allocation6 [shape = 's32[2]{0}', space=sflag, size = 0x8, scoped, tag = 'scoped memory for tpu_custom_call.1']
    %16 = vsyncpa [#allocation6], 0
    %s17 = scalar_lea.sflag [#allocation6], 1
    %18 = vsyncpa %s17, 0
    loop: start=0, step=1, limit=4
    $region2: #{tpu_custom_call.1} parent=1 // loop_pre_header
      _
    $region3: #{tpu_custom_call.1} parent=1 // loop_header
      %s20 = sphi 0, %s24
      %p21 = scmp.ge.s32.totalorder %s20, 4
      %s30 = sphi 0, %s32
      %s33 = sphi 0, %s30
      %s34 = sphi 0, %s33
      %s50 = sphi 0, %s34
      %s54 = sphi 0, %s54
      %s56 = sphi 0, %s54
      %s57 = sphi 0, %s56
      %s71 = sphi 0, %s57
      %s75 = sphi 0, %s75
      %s77 = sphi 0, %s75
      %s78 = sphi 0, %s77
      %s92 = sphi 0, %s78
      %s96 = sphi 0, %s96
      %s98 = sphi 0, %s96
      %s99 = sphi 0, %s98
      %s113 = sphi 0, %s99
      %s117 = sphi 0, %s117
      %s119 = sphi 0, %s117
      %s120 = sphi 0, %s119
      %s134 = sphi 0, %s120
      %s138 = sphi 0, %s138
      %s140 = sphi 0, %s138
      %s141 = sphi 0, %s140
      %s155 = sphi 0, %s141
      %s159 = sphi 0, %s159
      %s161 = sphi 0, %s159
      %s162 = sphi 0, %s161
      %s176 = sphi 0, %s162
      %s182 = sphi 0, %s184
      %s185 = sphi 0, %s182
      %s186 = sphi 0, %s185
      %s202 = sphi 0, %s186
    $region4: #{tpu_custom_call.1} parent=1 // loop_header_branch
      %23 = sbr.rel (%p21) target = $region8
    $region5: #{tpu_custom_call.1} parent=1 // loop_body
      %s25 = ssub.s32 %s20, 1
      %s26 = ssub.s32 %s20, 2
      %s27 = sadd.s32 %s20, 1
      %s28 = ssub.s32 %s20, %s27
      %p29 = scmp.eq.s32.totalorder %s28, 0
      %s31 = sadd.s32 %s30, 1
      %s32 = scalar_select %p29, %s30, %s31
      %p35 = pneg %p29
      %p36 = scmp.eq.s32.totalorder %s20, 1
      %p37 = por %p35, %p36
      %p38 = scmp.ne.s32.totalorder %s30, %s33
      %p39 = scmp.eq.s32.totalorder %s20, 0
      %p40 = por %p38, %p39
      %p41 = scmp.ne.s32.totalorder %s30, %s33
      %p42 = scmp.eq.s32.totalorder %s25, 1
      %p43 = por %p41, %p42
      %p44 = scmp.ne.s32.totalorder %s33, %s34
      %p45 = scmp.eq.s32.totalorder %s25, 0
      %p46 = por %p44, %p45
      %p47 = scmp.ne.s32.totalorder %s33, %s34
      %p48 = scmp.eq.s32.totalorder %s26, 1
      %p49 = por %p47, %p48
      %p51 = scmp.ne.s32.totalorder %s34, %s50
      %p52 = scmp.eq.s32.totalorder %s26, 0
      %p53 = por %p51, %p52
      %s55 = sadd.s32 %s54, 1
      %p58 = scmp.eq.s32.totalorder %s20, 1
      %p59 = scmp.ne.s32.totalorder %s54, %s56
      %p60 = scmp.eq.s32.totalorder %s20, 0
      %p61 = por %p59, %p60
      %p62 = scmp.ne.s32.totalorder %s54, %s56
      %p63 = scmp.eq.s32.totalorder %s25, 1
      %p64 = por %p62, %p63
      %p65 = scmp.ne.s32.totalorder %s56, %s57
      %p66 = scmp.eq.s32.totalorder %s25, 0
      %p67 = por %p65, %p66
      %p68 = scmp.ne.s32.totalorder %s56, %s57
      %p69 = scmp.eq.s32.totalorder %s26, 1
      %p70 = por %p68, %p69
      %p72 = scmp.ne.s32.totalorder %s57, %s71
      %p73 = scmp.eq.s32.totalorder %s26, 0
      %p74 = por %p72, %p73
      %s76 = sadd.s32 %s75, 1
      %p79 = scmp.eq.s32.totalorder %s20, 1
      %p80 = scmp.ne.s32.totalorder %s75, %s77
      %p81 = scmp.eq.s32.totalorder %s20, 0
      %p82 = por %p80, %p81
      %p83 = scmp.ne.s32.totalorder %s75, %s77
      %p84 = scmp.eq.s32.totalorder %s25, 1
      %p85 = por %p83, %p84
      %p86 = scmp.ne.s32.totalorder %s77, %s78
      %p87 = scmp.eq.s32.totalorder %s25, 0
      %p88 = por %p86, %p87
      %p89 = scmp.ne.s32.totalorder %s77, %s78
      %p90 = scmp.eq.s32.totalorder %s26, 1
      %p91 = por %p89, %p90
      %p93 = scmp.ne.s32.totalorder %s78, %s92
      %p94 = scmp.eq.s32.totalorder %s26, 0
      %p95 = por %p93, %p94
      %s97 = sadd.s32 %s96, 1
      %p100 = scmp.eq.s32.totalorder %s20, 1
      %p101 = scmp.ne.s32.totalorder %s96, %s98
      %p102 = scmp.eq.s32.totalorder %s20, 0
      %p103 = por %p101, %p102
      %p104 = scmp.ne.s32.totalorder %s96, %s98
      %p105 = scmp.eq.s32.totalorder %s25, 1
      %p106 = por %p104, %p105
      %p107 = scmp.ne.s32.totalorder %s98, %s99
      %p108 = scmp.eq.s32.totalorder %s25, 0
      %p109 = por %p107, %p108
      %p110 = scmp.ne.s32.totalorder %s98, %s99
      %p111 = scmp.eq.s32.totalorder %s26, 1
      %p112 = por %p110, %p111
      %p114 = scmp.ne.s32.totalorder %s99, %s113
      %p115 = scmp.eq.s32.totalorder %s26, 0
      %p116 = por %p114, %p115
      %s118 = sadd.s32 %s117, 1
      %p121 = scmp.eq.s32.totalorder %s20, 1
      %p122 = scmp.ne.s32.totalorder %s117, %s119
      %p123 = scmp.eq.s32.totalorder %s20, 0
      %p124 = por %p122, %p123
      %p125 = scmp.ne.s32.totalorder %s117, %s119
      %p126 = scmp.eq.s32.totalorder %s25, 1
      %p127 = por %p125, %p126
      %p128 = scmp.ne.s32.totalorder %s119, %s120
      %p129 = scmp.eq.s32.totalorder %s25, 0
      %p130 = por %p128, %p129
      %p131 = scmp.ne.s32.totalorder %s119, %s120
      %p132 = scmp.eq.s32.totalorder %s26, 1
      %p133 = por %p131, %p132
      %p135 = scmp.ne.s32.totalorder %s120, %s134
      %p136 = scmp.eq.s32.totalorder %s26, 0
      %p137 = por %p135, %p136
      %s139 = sadd.s32 %s138, 1
      %p142 = scmp.eq.s32.totalorder %s20, 1
      %p143 = scmp.ne.s32.totalorder %s138, %s140
      %p144 = scmp.eq.s32.totalorder %s20, 0
      %p145 = por %p143, %p144
      %p146 = scmp.ne.s32.totalorder %s138, %s140
      %p147 = scmp.eq.s32.totalorder %s25, 1
      %p148 = por %p146, %p147
      %p149 = scmp.ne.s32.totalorder %s140, %s141
      %p150 = scmp.eq.s32.totalorder %s25, 0
      %p151 = por %p149, %p150
      %p152 = scmp.ne.s32.totalorder %s140, %s141
      %p153 = scmp.eq.s32.totalorder %s26, 1
      %p154 = por %p152, %p153
      %p156 = scmp.ne.s32.totalorder %s141, %s155
      %p157 = scmp.eq.s32.totalorder %s26, 0
      %p158 = por %p156, %p157
      %s160 = sadd.s32 %s159, 1
      %p163 = scmp.eq.s32.totalorder %s20, 1
      %p164 = scmp.ne.s32.totalorder %s159, %s161
      %p165 = scmp.eq.s32.totalorder %s20, 0
      %p166 = por %p164, %p165
      %p167 = scmp.ne.s32.totalorder %s159, %s161
      %p168 = scmp.eq.s32.totalorder %s25, 1
      %p169 = por %p167, %p168
      %p170 = scmp.ne.s32.totalorder %s161, %s162
      %p171 = scmp.eq.s32.totalorder %s25, 0
      %p172 = por %p170, %p171
      %p173 = scmp.ne.s32.totalorder %s161, %s162
      %p174 = scmp.eq.s32.totalorder %s26, 1
      %p175 = por %p173, %p174
      %p177 = scmp.ne.s32.totalorder %s162, %s176
      %p178 = scmp.eq.s32.totalorder %s26, 0
      %p179 = por %p177, %p178
      %s180 = ssub.s32 %s20, %s27
      %p181 = scmp.eq.s32.totalorder %s180, 0
      %s183 = sadd.s32 %s182, 1
      %s184 = scalar_select %p181, %s182, %s183
      %p187 = pneg %p181
      %p188 = scmp.eq.s32.totalorder %s20, 1
      %p189 = por %p187, %p188
      %p190 = scmp.ne.s32.totalorder %s182, %s185
      %p191 = scmp.eq.s32.totalorder %s20, 0
      %p192 = por %p190, %p191
      %p193 = scmp.ne.s32.totalorder %s182, %s185
      %p194 = scmp.eq.s32.totalorder %s25, 1
      %p195 = por %p193, %p194
      %p196 = scmp.ne.s32.totalorder %s185, %s186
      %p197 = scmp.eq.s32.totalorder %s25, 0
      %p198 = por %p196, %p197
      %p199 = scmp.ne.s32.totalorder %s185, %s186
      %p200 = scmp.eq.s32.totalorder %s26, 1
      %p201 = por %p199, %p200
      %p203 = scmp.ne.s32.totalorder %s186, %s202
      %p204 = scmp.eq.s32.totalorder %s26, 0
      %p205 = por %p203, %p204
      %p206 = scmp.le.s32.totalorder 1, %s20
      %p207 = scmp.lt.s32.totalorder %s20, 3
      %p208 = pnand %p206, %p207
      %p209 = pneg %p208
      // Predicated region
      $region9: #{tpu_custom_call.1} parent=5 // pred_check
        _
      $region10: #{tpu_custom_call.1} parent=5 // pred_check_branch
        %211 = sbr.rel (%p208) target = $region12
      $region11: #{tpu_custom_call.1} parent=5 // pred_region
        %s212 = ssub.s32 %s20, 1
        // Predicated region
        $region13: #{tpu_custom_call.1} parent=11 // pred_check
          %p213 = pneg %p67
        $region14: #{tpu_custom_call.1} parent=11 // pred_check_branch
          %215 = sbr.rel (%p213) target = $region16
        $region15: #{tpu_custom_call.1} parent=11 // pred_region
          _
        $region16: #{tpu_custom_call.1} parent=11 // pred_fallthru
          _
        // Predicated region
        $region17: #{tpu_custom_call.1} parent=11 // pred_check
          %p216 = pneg %p88
        $region18: #{tpu_custom_call.1} parent=11 // pred_check_branch
          %218 = sbr.rel (%p216) target = $region20
        $region19: #{tpu_custom_call.1} parent=11 // pred_region
          _
        $region20: #{tpu_custom_call.1} parent=11 // pred_fallthru
          _
        // Predicated region
        $region21: #{tpu_custom_call.1} parent=11 // pred_check
          %p219 = pneg %p109
        $region22: #{tpu_custom_call.1} parent=11 // pred_check_branch
          %221 = sbr.rel (%p219) target = $region24
        $region23: #{tpu_custom_call.1} parent=11 // pred_region
          _
        $region24: #{tpu_custom_call.1} parent=11 // pred_fallthru
          _
        // Predicated region
        $region25: #{tpu_custom_call.1} parent=11 // pred_check
          %p222 = pneg %p130
        $region26: #{tpu_custom_call.1} parent=11 // pred_check_branch
          %224 = sbr.rel (%p222) target = $region28
        $region27: #{tpu_custom_call.1} parent=11 // pred_region
          _
        $region28: #{tpu_custom_call.1} parent=11 // pred_fallthru
          _
        // Predicated region
        $region29: #{tpu_custom_call.1} parent=11 // pred_check
          %p225 = pneg %p151
        $region30: #{tpu_custom_call.1} parent=11 // pred_check_branch
          %227 = sbr.rel (%p225) target = $region32
        $region31: #{tpu_custom_call.1} parent=11 // pred_region
          _
        $region32: #{tpu_custom_call.1} parent=11 // pred_fallthru
          _
        // Predicated region
        $region33: #{tpu_custom_call.1} parent=11 // pred_check
          %p228 = pneg %p172
        $region34: #{tpu_custom_call.1} parent=11 // pred_check_branch
          %230 = sbr.rel (%p228) target = $region36
        $region35: #{tpu_custom_call.1} parent=11 // pred_region
          _
        $region36: #{tpu_custom_call.1} parent=11 // pred_fallthru
          _
      $region12: #{tpu_custom_call.1} parent=5 // pred_fallthru
        _
      %p231 = scmp.lt.s32.totalorder %s20, 2
      // Predicated region
      $region37: #{tpu_custom_call.1} parent=5 // pred_check
        %p232 = pneg %p231
      $region38: #{tpu_custom_call.1} parent=5 // pred_check_branch
        %234 = sbr.rel (%p232) target = $region40
      $region39: #{tpu_custom_call.1} parent=5 // pred_region
        // Predicated region
        $region41: #{tpu_custom_call.1} parent=39 // pred_check
          %p235 = pneg %p40
        $region42: #{tpu_custom_call.1} parent=39 // pred_check_branch
          %237 = sbr.rel (%p235) target = $region44
        $region43: #{tpu_custom_call.1} parent=39 // pred_region
          %s238 = smul.u32 32, %s20
          %p239 = scmp.lt.s32.totalorder %s238, 63
          %s240 = scalar_select %p239, %s238, 63
          %s241 = smul.addr %s240, 8
          %s242 = scalar_lea.vmem %s1, %s241
          %s243 = smul.u32 32, %s20
        $region44: #{tpu_custom_call.1} parent=39 // pred_fallthru
          _
      $region40: #{tpu_custom_call.1} parent=5 // pred_fallthru
        _
      %p244 = scmp.le.s32.totalorder 1, %s20
      %p245 = scmp.lt.s32.totalorder %s20, 3
      %p246 = pnand %p244, %p245
      %p247 = pneg %p246
      // Predicated region
      $region45: #{tpu_custom_call.1} parent=5 // pred_check
        _
      $region46: #{tpu_custom_call.1} parent=5 // pred_check_branch
        %249 = sbr.rel (%p246) target = $region48
      $region47: #{tpu_custom_call.1} parent=5 // pred_region
        %s250 = ssub.s32 %s20, 1
        %s251 = smul.u32 32, %s25
        %p252 = scmp.lt.s32.totalorder %s251, 63
        %s253 = scalar_select %p252, %s251, 63
        %s254 = smul.addr %s253, 8
        %s255 = scalar_lea.vmem %s1, %s254
        %p256 = pneg %p46
        %p257 = pneg %p43
        %p258 = pneg %p67
        %p259 = pneg %p64
        %p260 = pneg %p88
        %p261 = pneg %p85
        %p262 = pneg %p109
        %p263 = pneg %p106
        %p264 = pneg %p130
        %p265 = pneg %p127
        %p266 = pneg %p151
        %p267 = pneg %p148
        %p268 = pneg %p172
        %p269 = pneg %p169
        %p270 = pneg %p198
        %p271 = pneg %p195
        %s272 = sand.u32 %s185, 1
        %s273 = scalar_lea.sflag [#allocation6], %s272
        %s274 = sand.u32 %s185, 1
        %s275 = smul.addr %s274, 2
        %s276 = scalar_lea.vmem [#allocation5], %s275
        %s277 = smul.u32 32, %s25
        %p278 = scmp.lt.s32.totalorder %s277, 63
        %s279 = scalar_select %p278, %s277, 63
        %s280 = smul.addr %s279, 8
        %s281 = scalar_lea.vmem %s1, %s280
        %s282 = smul.u32 32, %s25
        %v284 = vld [vmem:[%s281] sm:$0xff]
        %v285 = vld [vmem:[%s281 + $0x8] sm:$0xff]
        %v286 = vld [vmem:[%s281 + $0x10] sm:$0xff]
        %v287 = vld [vmem:[%s281 + $0x18] sm:$0xff]
        %v288 = vld [vmem:[%s281 + $0x20] sm:$0xff]
        %v289 = vld [vmem:[%s281 + $0x28] sm:$0xff]
        %v290 = vld [vmem:[%s281 + $0x30] sm:$0xff]
        %v291 = vld [vmem:[%s281 + $0x38] sm:$0xff]
        %v292 = vld [vmem:[%s281 + $0x40] sm:$0xff]
        %v293 = vld [vmem:[%s281 + $0x48] sm:$0xff]
        %v294 = vld [vmem:[%s281 + $0x50] sm:$0xff]
        %v295 = vld [vmem:[%s281 + $0x58] sm:$0xff]
        %v296 = vld [vmem:[%s281 + $0x60] sm:$0xff]
        %v297 = vld [vmem:[%s281 + $0x68] sm:$0xff]
        %v298 = vld [vmem:[%s281 + $0x70] sm:$0xff]
        %v299 = vld [vmem:[%s281 + $0x78] sm:$0xff]
        %v300 = vld [vmem:[%s281 + $0x80] sm:$0xff]
        %v301 = vld [vmem:[%s281 + $0x88] sm:$0xff]
        %v302 = vld [vmem:[%s281 + $0x90] sm:$0xff]
        %v303 = vld [vmem:[%s281 + $0x98] sm:$0xff]
        %v304 = vld [vmem:[%s281 + $0xa0] sm:$0xff]
        %v305 = vld [vmem:[%s281 + $0xa8] sm:$0xff]
        %v306 = vld [vmem:[%s281 + $0xb0] sm:$0xff]
        %v307 = vld [vmem:[%s281 + $0xb8] sm:$0xff]
        %v308 = vld [vmem:[%s281 + $0xc0] sm:$0xff]
        %v309 = vld [vmem:[%s281 + $0xc8] sm:$0xff]
        %v310 = vld [vmem:[%s281 + $0xd0] sm:$0xff]
        %v311 = vld [vmem:[%s281 + $0xd8] sm:$0xff]
        %v312 = vld [vmem:[%s281 + $0xe0] sm:$0xff]
        %v313 = vld [vmem:[%s281 + $0xe8] sm:$0xff]
        %v314 = vld [vmem:[%s281 + $0xf0] sm:$0xff]
        %v315 = vld [vmem:[%s281 + $0xf8] sm:$0xff]
        %v316 = vpack.c.bf16 %v285, %v284
        %v317 = vpack.c.bf16 %v287, %v286
        %v318 = vpack.c.bf16 %v289, %v288
        %v319 = vpack.c.bf16 %v291, %v290
        %v320 = vpack.c.bf16 %v293, %v292
        %v321 = vpack.c.bf16 %v295, %v294
        %v322 = vpack.c.bf16 %v297, %v296
        %v323 = vpack.c.bf16 %v299, %v298
        %v324 = vpack.c.bf16 %v301, %v300
        %v325 = vpack.c.bf16 %v303, %v302
        %v326 = vpack.c.bf16 %v305, %v304
        %v327 = vpack.c.bf16 %v307, %v306
        %v328 = vpack.c.bf16 %v309, %v308
        %v329 = vpack.c.bf16 %v311, %v310
        %v330 = vpack.c.bf16 %v313, %v312
        %v331 = vpack.c.bf16 %v315, %v314
        %v332 = vld [vmem:[%s2] sm:$0xf]
        %v333 = vld [vmem:[%s2 + $0x4] sm:$0xf]
        %v334 = vld [vmem:[%s2 + $0x8] sm:$0xf]
        %v335 = vld [vmem:[%s2 + $0xc] sm:$0xf]
        %v336 = vld [vmem:[%s2 + $0x10] sm:$0xf]
        %v337 = vld [vmem:[%s2 + $0x14] sm:$0xf]
        %v338 = vld [vmem:[%s2 + $0x18] sm:$0xf]
        %v339 = vld [vmem:[%s2 + $0x1c] sm:$0xf]
        %v340 = vld [vmem:[%s2 + $0x20] sm:$0xf]
        %v341 = vld [vmem:[%s2 + $0x24] sm:$0xf]
        %v342 = vld [vmem:[%s2 + $0x28] sm:$0xf]
        %v343 = vld [vmem:[%s2 + $0x2c] sm:$0xf]
        %v344 = vld [vmem:[%s2 + $0x30] sm:$0xf]
        %v345 = vld [vmem:[%s2 + $0x34] sm:$0xf]
        %v346 = vld [vmem:[%s2 + $0x38] sm:$0xf]
        %v347 = vld [vmem:[%s2 + $0x3c] sm:$0xf]
        %v348 = vld [vmem:[%s3] sm:$0xff]
        %v349 = vld [vmem:[%s3 + $0x8] sm:$0xff]
        %v350 = vld [vmem:[%s3 + $0x10] sm:$0xff]
        %v351 = vld [vmem:[%s3 + $0x18] sm:$0xff]
        %v352 = vld [vmem:[%s3 + $0x20] sm:$0xff]
        %v353 = vld [vmem:[%s3 + $0x28] sm:$0xff]
        %v354 = vld [vmem:[%s3 + $0x30] sm:$0xff]
        %v355 = vld [vmem:[%s3 + $0x38] sm:$0xff]
        %v356 = vld [vmem:[%s3 + $0x40] sm:$0xff]
        %v357 = vld [vmem:[%s3 + $0x48] sm:$0xff]
        %v358 = vld [vmem:[%s3 + $0x50] sm:$0xff]
        %v359 = vld [vmem:[%s3 + $0x58] sm:$0xff]
        %v360 = vld [vmem:[%s3 + $0x60] sm:$0xff]
        %v361 = vld [vmem:[%s3 + $0x68] sm:$0xff]
        %v362 = vld [vmem:[%s3 + $0x70] sm:$0xff]
        %v363 = vld [vmem:[%s3 + $0x78] sm:$0xff]
        %365 = vset.pattern.permute.xlu0 0
        %366 = vperm.xlu0 %365, %v348
        %v367 = vpop.permute.xlu0 %366
        %370 = vset.pattern.permute.xlu0 0
        %371 = vperm.xlu0 %370, %v349
        %v372 = vpop.permute.xlu0 %371
        %375 = vset.pattern.permute.xlu0 0
        %376 = vperm.xlu0 %375, %v350
        %v377 = vpop.permute.xlu0 %376
        %380 = vset.pattern.permute.xlu0 0
        %381 = vperm.xlu0 %380, %v351
        %v382 = vpop.permute.xlu0 %381
        %385 = vset.pattern.permute.xlu0 0
        %386 = vperm.xlu0 %385, %v352
        %v387 = vpop.permute.xlu0 %386
        %390 = vset.pattern.permute.xlu0 0
        %391 = vperm.xlu0 %390, %v353
        %v392 = vpop.permute.xlu0 %391
        %395 = vset.pattern.permute.xlu0 0
        %396 = vperm.xlu0 %395, %v354
        %v397 = vpop.permute.xlu0 %396
        %400 = vset.pattern.permute.xlu0 0
        %401 = vperm.xlu0 %400, %v355
        %v402 = vpop.permute.xlu0 %401
        %405 = vset.pattern.permute.xlu0 0
        %406 = vperm.xlu0 %405, %v356
        %v407 = vpop.permute.xlu0 %406
        %410 = vset.pattern.permute.xlu0 0
        %411 = vperm.xlu0 %410, %v357
        %v412 = vpop.permute.xlu0 %411
        %415 = vset.pattern.permute.xlu0 0
        %416 = vperm.xlu0 %415, %v358
        %v417 = vpop.permute.xlu0 %416
        %420 = vset.pattern.permute.xlu0 0
        %421 = vperm.xlu0 %420, %v359
        %v422 = vpop.permute.xlu0 %421
        %425 = vset.pattern.permute.xlu0 0
        %426 = vperm.xlu0 %425, %v360
        %v427 = vpop.permute.xlu0 %426
        %430 = vset.pattern.permute.xlu0 0
        %431 = vperm.xlu0 %430, %v361
        %v432 = vpop.permute.xlu0 %431
        %435 = vset.pattern.permute.xlu0 0
        %436 = vperm.xlu0 %435, %v362
        %v437 = vpop.permute.xlu0 %436
        %440 = vset.pattern.permute.xlu0 0
        %441 = vperm.xlu0 %440, %v363
        %v442 = vpop.permute.xlu0 %441
        %v460 = vunpack.c.l.b16 %v332
        %v461 = vunpack.c.l.b16 %v333
        %v462 = vunpack.c.l.b16 %v334
        %v463 = vunpack.c.l.b16 %v335
        %v464 = vunpack.c.l.b16 %v336
        %v465 = vunpack.c.l.b16 %v337
        %v466 = vunpack.c.l.b16 %v338
        %v467 = vunpack.c.l.b16 %v339
        %v468 = vunpack.c.l.b16 %v340
        %v469 = vunpack.c.l.b16 %v341
        %v470 = vunpack.c.l.b16 %v342
        %v471 = vunpack.c.l.b16 %v343
        %v472 = vunpack.c.l.b16 %v344
        %v473 = vunpack.c.l.b16 %v345
        %v474 = vunpack.c.l.b16 %v346
        %v475 = vunpack.c.l.b16 %v347
        %v476 = vpack.c.b16 %v461, %v460
        %v477 = vpack.c.b16 %v463, %v462
        %v478 = vpack.c.b16 %v465, %v464
        %v479 = vpack.c.b16 %v467, %v466
        %v480 = vpack.c.b16 %v469, %v468
        %v481 = vpack.c.b16 %v471, %v470
        %v482 = vpack.c.b16 %v473, %v472
        %v483 = vpack.c.b16 %v475, %v474
        %vm484 = vcmask 261120
        %v486 = vsel %vm484, %v476, 0
        %v489 = vsel %vm484, %v477, 0
        %v492 = vsel %vm484, %v478, 0
        %v495 = vsel %vm484, %v479, 0
        %v498 = vsel %vm484, %v480, 0
        %v501 = vsel %vm484, %v481, 0
        %v504 = vsel %vm484, %v482, 0
        %v507 = vsel %vm484, %v483, 0
        %v510 = vsel %vm484, %v316, 0
        %v513 = vsel %vm484, %v317, 0
        %v516 = vsel %vm484, %v318, 0
        %v519 = vsel %vm484, %v319, 0
        %v522 = vsel %vm484, %v320, 0
        %v525 = vsel %vm484, %v321, 0
        %v528 = vsel %vm484, %v322, 0
        %v531 = vsel %vm484, %v323, 0
        %v534 = vsel %vm484, %v324, 0
        %v537 = vsel %vm484, %v325, 0
        %v540 = vsel %vm484, %v326, 0
        %v543 = vsel %vm484, %v327, 0
        %v546 = vsel %vm484, %v328, 0
        %v549 = vsel %vm484, %v329, 0
        %v552 = vsel %vm484, %v330, 0
        %v555 = vsel %vm484, %v331, 0
        %557 = vmatpush.bf16.xpose.msra.mxu0 %v531
        %558 = vmatpush.bf16.xpose.msra.mxu0 %v528
        %559 = vmatpush.bf16.xpose.msra.mxu0 %v525
        %560 = vmatpush.bf16.xpose.msra.mxu0 %v522
        %561 = vmatpush.bf16.xpose.msra.mxu0 %v519
        %562 = vmatpush.bf16.xpose.msra.mxu0 %v516
        %563 = vmatpush.bf16.xpose.msra.mxu0 %v513
        %564 = vmatpush.bf16.xpose.msra.mxu0 %v510
        %565 = vmatmul.bf16.gmra.mxu0 %v486
        %v566 = vpop.f32.mrf.mxu0
        %v567 = vadd.f32 %v367, %v566
        %v568 = vpop.f32.mrf.mxu0
        %v569 = vadd.f32 %v372, %v568
        %570 = vmatmul.bf16.gmra.mxu0 %v489
        %v571 = vpop.f32.mrf.mxu0
        %v572 = vadd.f32 %v377, %v571
        %v573 = vpop.f32.mrf.mxu0
        %v574 = vadd.f32 %v382, %v573
        %575 = vmatmul.bf16.gmra.mxu0 %v492
        %v576 = vpop.f32.mrf.mxu0
        %v577 = vadd.f32 %v387, %v576
        %v578 = vpop.f32.mrf.mxu0
        %v579 = vadd.f32 %v392, %v578
        %580 = vmatmul.bf16.gmra.mxu0 %v495
        %v581 = vpop.f32.mrf.mxu0
        %v582 = vadd.f32 %v397, %v581
        %v583 = vpop.f32.mrf.mxu0
        %v584 = vadd.f32 %v402, %v583
        %585 = vmatmul.bf16.gmra.mxu0 %v498
        %v586 = vpop.f32.mrf.mxu0
        %v587 = vadd.f32 %v407, %v586
        %v588 = vpop.f32.mrf.mxu0
        %v589 = vadd.f32 %v412, %v588
        %590 = vmatmul.bf16.gmra.mxu0 %v501
        %v591 = vpop.f32.mrf.mxu0
        %v592 = vadd.f32 %v417, %v591
        %v593 = vpop.f32.mrf.mxu0
        %v594 = vadd.f32 %v422, %v593
        %595 = vmatmul.bf16.gmra.mxu0 %v504
        %v596 = vpop.f32.mrf.mxu0
        %v597 = vadd.f32 %v427, %v596
        %v598 = vpop.f32.mrf.mxu0
        %v599 = vadd.f32 %v432, %v598
        %600 = vmatmul.bf16.gmra.mxu0 %v507
        %v601 = vpop.f32.mrf.mxu0
        %v602 = vadd.f32 %v437, %v601
        %v603 = vpop.f32.mrf.mxu0
        %v604 = vadd.f32 %v442, %v603
        %605 = vdwg.mxu0
        %606 = vmatpush.bf16.xpose.msra.mxu0 %v555
        %607 = vmatpush.bf16.xpose.msra.mxu0 %v552
        %608 = vmatpush.bf16.xpose.msra.mxu0 %v549
        %609 = vmatpush.bf16.xpose.msra.mxu0 %v546
        %610 = vmatpush.bf16.xpose.msra.mxu0 %v543
        %611 = vmatpush.bf16.xpose.msra.mxu0 %v540
        %612 = vmatpush.bf16.xpose.msra.mxu0 %v537
        %613 = vmatpush.bf16.xpose.msra.mxu0 %v534
        %614 = vmatmul.bf16.gmra.mxu0 %v486
        %v615 = vpop.f32.mrf.mxu0
        %v616 = vadd.f32 %v367, %v615
        %v617 = vpop.f32.mrf.mxu0
        %v618 = vadd.f32 %v372, %v617
        %619 = vmatmul.bf16.gmra.mxu0 %v489
        %v620 = vpop.f32.mrf.mxu0
        %v621 = vadd.f32 %v377, %v620
        %v622 = vpop.f32.mrf.mxu0
        %v623 = vadd.f32 %v382, %v622
        %624 = vmatmul.bf16.gmra.mxu0 %v492
        %v625 = vpop.f32.mrf.mxu0
        %v626 = vadd.f32 %v387, %v625
        %v627 = vpop.f32.mrf.mxu0
        %v628 = vadd.f32 %v392, %v627
        %629 = vmatmul.bf16.gmra.mxu0 %v495
        %v630 = vpop.f32.mrf.mxu0
        %v631 = vadd.f32 %v397, %v630
        %v632 = vpop.f32.mrf.mxu0
        %v633 = vadd.f32 %v402, %v632
        %634 = vmatmul.bf16.gmra.mxu0 %v498
        %v635 = vpop.f32.mrf.mxu0
        %v636 = vadd.f32 %v407, %v635
        %v637 = vpop.f32.mrf.mxu0
        %v638 = vadd.f32 %v412, %v637
        %639 = vmatmul.bf16.gmra.mxu0 %v501
        %v640 = vpop.f32.mrf.mxu0
        %v641 = vadd.f32 %v417, %v640
        %v642 = vpop.f32.mrf.mxu0
        %v643 = vadd.f32 %v422, %v642
        %644 = vmatmul.bf16.gmra.mxu0 %v504
        %v645 = vpop.f32.mrf.mxu0
        %v646 = vadd.f32 %v427, %v645
        %v647 = vpop.f32.mrf.mxu0
        %v648 = vadd.f32 %v432, %v647
        %649 = vmatmul.bf16.gmra.mxu0 %v507
        %v650 = vpop.f32.mrf.mxu0
        %v651 = vadd.f32 %v437, %v650
        %v652 = vpop.f32.mrf.mxu0
        %v653 = vadd.f32 %v442, %v652
        %654 = vdwg.mxu0
        %v655 = vmax.f32 %v567, 0.0
        %v656 = vmax.f32 %v616, 0.0
        %v657 = vmax.f32 %v569, 0.0
        %v658 = vmax.f32 %v618, 0.0
        %v659 = vmax.f32 %v572, 0.0
        %v660 = vmax.f32 %v621, 0.0
        %v661 = vmax.f32 %v574, 0.0
        %v662 = vmax.f32 %v623, 0.0
        %v663 = vmax.f32 %v577, 0.0
        %v664 = vmax.f32 %v626, 0.0
        %v665 = vmax.f32 %v579, 0.0
        %v666 = vmax.f32 %v628, 0.0
        %v667 = vmax.f32 %v582, 0.0
        %v668 = vmax.f32 %v631, 0.0
        %v669 = vmax.f32 %v584, 0.0
        %v670 = vmax.f32 %v633, 0.0
        %v671 = vmax.f32 %v587, 0.0
        %v672 = vmax.f32 %v636, 0.0
        %v673 = vmax.f32 %v589, 0.0
        %v674 = vmax.f32 %v638, 0.0
        %v675 = vmax.f32 %v592, 0.0
        %v676 = vmax.f32 %v641, 0.0
        %v677 = vmax.f32 %v594, 0.0
        %v678 = vmax.f32 %v643, 0.0
        %v679 = vmax.f32 %v597, 0.0
        %v680 = vmax.f32 %v646, 0.0
        %v681 = vmax.f32 %v599, 0.0
        %v682 = vmax.f32 %v648, 0.0
        %v683 = vmax.f32 %v602, 0.0
        %v684 = vmax.f32 %v651, 0.0
        %v685 = vmax.f32 %v604, 0.0
        %v686 = vmax.f32 %v653, 0.0
        %v687 = vld [vmem:[%s4] sm:$0xf]
        %v688 = vld [vmem:[%s4 + $0x4] sm:$0xf]
        %v689 = vld [vmem:[%s4 + $0x8] sm:$0xf]
        %v690 = vld [vmem:[%s4 + $0xc] sm:$0xf]
        %v691 = vpack.c.bf16 %v657, %v655
        %v692 = vpack.c.bf16 %v658, %v656
        %v693 = vpack.c.bf16 %v661, %v659
        %v694 = vpack.c.bf16 %v662, %v660
        %v695 = vpack.c.bf16 %v665, %v663
        %v696 = vpack.c.bf16 %v666, %v664
        %v697 = vpack.c.bf16 %v669, %v667
        %v698 = vpack.c.bf16 %v670, %v668
        %v699 = vpack.c.bf16 %v673, %v671
        %v700 = vpack.c.bf16 %v674, %v672
        %v701 = vpack.c.bf16 %v677, %v675
        %v702 = vpack.c.bf16 %v678, %v676
        %v703 = vpack.c.bf16 %v681, %v679
        %v704 = vpack.c.bf16 %v682, %v680
        %v705 = vpack.c.bf16 %v685, %v683
        %v706 = vpack.c.bf16 %v686, %v684
        %v707 = vld [vmem:[%s5] sm:$0xff]
        %v708 = vld [vmem:[%s5 + $0x8] sm:$0xff]
        %v709 = vld [vmem:[%s5 + $0x10] sm:$0xff]
        %v710 = vld [vmem:[%s5 + $0x18] sm:$0xff]
        %712 = vset.pattern.permute.xlu0 0
        %713 = vperm.xlu0 %712, %v707
        %v714 = vpop.permute.xlu0 %713
        %717 = vset.pattern.permute.xlu0 0
        %718 = vperm.xlu0 %717, %v708
        %v719 = vpop.permute.xlu0 %718
        %722 = vset.pattern.permute.xlu0 0
        %723 = vperm.xlu0 %722, %v709
        %v724 = vpop.permute.xlu0 %723
        %727 = vset.pattern.permute.xlu0 0
        %728 = vperm.xlu0 %727, %v710
        %v729 = vpop.permute.xlu0 %728
        %v735 = vunpack.c.l.b16 %v687
        %v736 = vunpack.c.l.b16 %v688
        %v737 = vunpack.c.l.b16 %v689
        %v738 = vunpack.c.l.b16 %v690
        %v739 = vpack.c.b16 %v736, %v735
        %v740 = vpack.c.b16 %v738, %v737
        %743 = vmatpush.bf16.msra.mxu0 %v705
        %744 = vmatpush.bf16.msra.mxu0 %v703
        %745 = vmatpush.bf16.msra.mxu0 %v701
        %746 = vmatpush.bf16.msra.mxu0 %v699
        %747 = vmatpush.bf16.msra.mxu0 %v697
        %748 = vmatpush.bf16.msra.mxu0 %v695
        %749 = vmatpush.bf16.msra.mxu0 %v693
        %750 = vmatpush.bf16.msra.mxu0 %v691
        %751 = vmatmul.bf16.gmra.mxu0 %v739
        %v752 = vpop.f32.mrf.mxu0
        %v753 = vadd.f32 %v714, %v752
        %v754 = vpop.f32.mrf.mxu0
        %v755 = vadd.f32 %v719, %v754
        %756 = vmatmul.bf16.gmra.mxu0 %v740
        %v757 = vpop.f32.mrf.mxu0
        %v758 = vadd.f32 %v724, %v757
        %v759 = vpop.f32.mrf.mxu0
        %v760 = vadd.f32 %v729, %v759
        %761 = vdwg.mxu0
        %762 = vmatpush.bf16.msra.mxu0 %v706
        %763 = vmatpush.bf16.msra.mxu0 %v704
        %764 = vmatpush.bf16.msra.mxu0 %v702
        %765 = vmatpush.bf16.msra.mxu0 %v700
        %766 = vmatpush.bf16.msra.mxu0 %v698
        %767 = vmatpush.bf16.msra.mxu0 %v696
        %768 = vmatpush.bf16.msra.mxu0 %v694
        %769 = vmatpush.bf16.msra.mxu0 %v692
        %770 = vmatmul.bf16.gmra.mxu0 %v739
        %v771 = vpop.f32.mrf.mxu0
        %v772 = vadd.f32 %v714, %v771
        %v773 = vpop.f32.mrf.mxu0
        %v774 = vadd.f32 %v719, %v773
        %775 = vmatmul.bf16.gmra.mxu0 %v740
        %v776 = vpop.f32.mrf.mxu0
        %v777 = vadd.f32 %v724, %v776
        %v778 = vpop.f32.mrf.mxu0
        %v779 = vadd.f32 %v729, %v778
        %780 = vdwg.mxu0
        %v781 = vmax.f32 %v753, 0.0
        %v782 = vmax.f32 %v772, 0.0
        %v783 = vmax.f32 %v755, 0.0
        %v784 = vmax.f32 %v774, 0.0
        %v785 = vmax.f32 %v758, 0.0
        %v786 = vmax.f32 %v777, 0.0
        %v787 = vmax.f32 %v760, 0.0
        %v788 = vmax.f32 %v779, 0.0
        %v789 = vld [vmem:[%s6] sm:$0x1]
        %v790 = vpack.c.bf16 %v783, %v781
        %v791 = vpack.c.bf16 %v784, %v782
        %v792 = vpack.c.bf16 %v787, %v785
        %v793 = vpack.c.bf16 %v788, %v786
        %v794 = vld [vmem:[#allocation4] sm:$0x1]
        %796 = vset.pattern.permute.xlu0 0
        %797 = vperm.xlu0 %796, %v794
        %v798 = vpop.permute.xlu0 %797
        %v800 = vperm.slane %v798, 0
        %v802 = vsel %vm484, %v789, 0
        %804 = vmatpush.bf16.msra.mxu0 0
        %805 = vmatpush.bf16.msra.mxu0 0
        %806 = vmatpush.bf16.msra.mxu0 0
        %807 = vmatpush.bf16.msra.mxu0 0
        %808 = vmatpush.bf16.msra.mxu0 0
        %809 = vmatpush.bf16.msra.mxu0 0
        %810 = vmatpush.bf16.msra.mxu0 %v792
        %811 = vmatpush.bf16.msra.mxu0 %v790
        %812 = vmatmul.bf16.gmra.mxu0 %v802
        %v813 = vpop.f32.mrf.mxu0
        %v814 = vadd.f32 %v800, %v813
        %v815 = vpop.f32.mrf.mxu0
        %816 = vdwg.mxu0
        %817 = vmatpush.bf16.msra.mxu0 0
        %818 = vmatpush.bf16.msra.mxu0 0
        %819 = vmatpush.bf16.msra.mxu0 0
        %820 = vmatpush.bf16.msra.mxu0 0
        %821 = vmatpush.bf16.msra.mxu0 0
        %822 = vmatpush.bf16.msra.mxu0 0
        %823 = vmatpush.bf16.msra.mxu0 %v793
        %824 = vmatpush.bf16.msra.mxu0 %v791
        %825 = vmatmul.bf16.gmra.mxu0 %v802
        %v826 = vpop.f32.mrf.mxu0
        %v827 = vadd.f32 %v800, %v826
        %v828 = vpop.f32.mrf.mxu0
        %829 = vdwg.mxu0
        %v832 = vrot.slane %v827, 7
        %vm833 = vcmask 1040384
        %v834 = vsel %vm833, %v814, %v832
        %v836 = vlaneseq
        %vm837 = vcmp.ge.s32.totalorder %v836, 0
        %vm838 = vcmp.lt.s32.totalorder %v836, 256
        %vm839 = vmand %vm837, %vm838
        %840 = vst.msk [vmem:[%s276] sm:$0x3] %vm839, %v834
        %s841 = sand.u32 %s185, 1
        %s842 = scalar_lea.sflag [#allocation6], %s841
        %s843 = sand.u32 %s185, 1
        %s844 = smul.addr %s843, 2
        %s845 = scalar_lea.vmem [#allocation5], %s844
        // Predicated region
        $region49: #{tpu_custom_call.1} parent=47 // pred_check
          %p846 = pneg %p195
        $region50: #{tpu_custom_call.1} parent=47 // pred_check_branch
          %848 = sbr.rel (%p846) target = $region52
        $region51: #{tpu_custom_call.1} parent=47 // pred_region
          %850 = vsyncadd %s842, 0
          %s851 = smul.addr %s25, 2
          %s852 = scalar_lea.hbm %s8, %s851
          %s854 = sshll.u32 %s845, 4
          %s855 = int_to_ptr.vmem [resolvable:$true] %s854
          %s856 = sshll.u32 %s852, 4
          %s857 = int_to_ptr.hbm [resolvable:$true] %s856
          %859 = dma.vmem_to_hbm [thread:$0]  %s855, 32, %s857, %s842
        $region52: #{tpu_custom_call.1} parent=47 // pred_fallthru
          _
      $region48: #{tpu_custom_call.1} parent=5 // pred_fallthru
        _
      %p860 = scmp.le.s32.totalorder 2, %s20
      // Predicated region
      $region53: #{tpu_custom_call.1} parent=5 // pred_check
        %p861 = pneg %p860
      $region54: #{tpu_custom_call.1} parent=5 // pred_check_branch
        %863 = sbr.rel (%p861) target = $region56
      $region55: #{tpu_custom_call.1} parent=5 // pred_region
        %s864 = ssub.s32 %s20, 2
        // Predicated region
        $region57: #{tpu_custom_call.1} parent=55 // pred_check
          %p865 = pneg %p201
        $region58: #{tpu_custom_call.1} parent=55 // pred_check_branch
          %867 = sbr.rel (%p865) target = $region60
        $region59: #{tpu_custom_call.1} parent=55 // pred_region
          %s868 = sand.u32 %s186, 1
          %s869 = scalar_lea.sflag [#allocation6], %s868
          %s870 = sand.u32 %s186, 1
          %s871 = smul.addr %s870, 2
          %s872 = scalar_lea.vmem [#allocation5], %s871
          %874 = dma.done %s869, 32
        $region60: #{tpu_custom_call.1} parent=55 // pred_fallthru
          _
      $region56: #{tpu_custom_call.1} parent=5 // pred_fallthru
        _
    $region6: #{tpu_custom_call.1} parent=1 // loop_footer
      %s24 = sadd.s32 1, %s20
    $region7: #{tpu_custom_call.1} parent=1 // loop_footer_branch
      %19 = sbr.rel target = $region3
    $region8: #{tpu_custom_call.1} parent=1 // loop_exit
      _
    %875 = vsyncpa [#allocation6], 1
    %s876 = scalar_lea.sflag [#allocation6], 1
    %877 = vsyncpa %s876, 1

</llo_original>
